<compile_context>
chip_gen: v6e
topology: v6e:2x2x1
jax: 0.10.0
libtpu: 0.0.40
codegen_flags: <defaults>
</compile_context>

<pallas_src>
import functools
import math

import jax
import jax.numpy as jnp
from jax.experimental import pallas as pl
from jax.experimental.pallas import tpu as pltpu


def _round_up(x: int, m: int) -> int:
    return ((x + m - 1) // m) * m


def _pick_chunk(n: int, cap: int) -> int:
    """Tokens per grid step, <= cap.

    Single step (tq == n) if everything fits; otherwise a multiple of 8,
    preferring one that divides n so the output needs no padding and no
    post-kernel slice copy.
    """
    cap = max(8, (cap // 8) * 8)
    if n <= cap:
        return n                      # block == full array: any size is legal
    lo = max(8, ((cap // 2) // 8) * 8)
    for tq in range(cap, lo - 1, -8):
        if n % tq == 0:
            return tq                 # divides n: no padding, reshape is a view
    return cap


# ----------------------------------------------------------------------------
# Fast path: table resident in VMEM, gather = one-hot @ table on the MXU.
# ----------------------------------------------------------------------------
def _embed_vmem_kernel(ids_ref, table_ref, out_ref, *, scale):
    # ids_ref  : (tq, 1)  int32 VMEM block of token ids for this step
    # table_ref: (V, D)   whole embedding table, VMEM resident (constant map)
    # out_ref  : (tq, D)  output block
    ids = ids_ref[...]                                       # (tq, 1)
    tq = ids.shape[0]
    vocab = table_ref.shape[0]
    onehot = (ids == jax.lax.broadcasted_iota(jnp.int32, (tq, vocab), 1)
              ).astype(table_ref.dtype)                      # (tq, V)
    gathered = jnp.dot(onehot, table_ref[...],
                       preferred_element_type=jnp.float32)   # (tq, D) on MXU
    out_ref[...] = (gathered * scale).astype(out_ref.dtype)


def _embed_vmem_table(ids, table, scale, n):
    vocab, d = table.shape
    itemsize = table.dtype.itemsize
    # VMEM per step ~= double-buffered table + 2 out blocks + (tq, V) one-hot.
    # Cap tq so this stays well under the 32 MiB scoped-VMEM default.
    cap = min(
        512,
        max(8, (4 * 1024 * 1024) // (vocab * 4)),            # one-hot (f32)
        max(8, (8 * 1024 * 1024) // (2 * d * itemsize)),     # out double buffer
    )
    tq = _pick_chunk(n, cap)
    n_pad = _round_up(n, tq)
    if n_pad != n:
        ids = jnp.pad(ids, (0, n_pad - n))                   # pad with valid id 0
    ids2 = ids.reshape(n_pad, 1)

    out = pl.pallas_call(
        functools.partial(_embed_vmem_kernel, scale=scale),
        out_shape=jax.ShapeDtypeStruct((n_pad, d), table.dtype),
        grid=(n_pad // tq,),
        in_specs=[
            pl.BlockSpec((tq, 1), lambda i: (i, 0)),          # ids chunk
            pl.BlockSpec((vocab, d), lambda i: (0, 0)),       # table: fetched once
        ],
        out_specs=pl.BlockSpec((tq, d), lambda i: (i, 0)),
        compiler_params=pltpu.CompilerParams(
            dimension_semantics=("parallel",),                # independent chunks
            vmem_limit_bytes=32 * 1024 * 1024),
    )(ids2, table)
    return out if n_pad == n else out[:n]


# ----------------------------------------------------------------------------
# Large-vocab path: table stays in HBM, per-row DMA gather, double-buffered.
# ----------------------------------------------------------------------------
def _embed_hbm_kernel(ids_ref, table_ref, out_ref, buf_ref, sem_ref, *, tq, scale):
    # ids_ref  : (n_pad,)    int32, SMEM (scalar prefetch)
    # table_ref: (V, D)      HBM ref (memory_space=pl.ANY) -- never fully loaded
    # out_ref  : (tq, D)     VMEM output block (auto-pipelined writeback)
    # buf_ref  : (2, tq, D)  VMEM gather scratch (manual cross-step double buffer)
    # sem_ref  : (2,)        DMA semaphores, one per buffer slot
    i = pl.program_id(0)
    nsteps = pl.num_programs(0)
    slot = i % 2
    unroll = max(1, math.gcd(tq, 8))

    def issue_chunk(chunk, slot_):
        # Hoisted, alignment-hinted base index; unrolled descriptor-issue loop.
        base = pl.multiple_of(chunk * tq, tq)

        def body(t, carry):
            row = ids_ref[base + t]
            pltpu.make_async_copy(
                table_ref.at[pl.ds(row, 1)],        # (1, D) row in HBM
                buf_ref.at[slot_, pl.ds(t, 1)],     # (1, D) row in VMEM
                sem_ref.at[slot_],
            ).start()
            return carry

        jax.lax.fori_loop(0, tq, body, 0, unroll=unroll)

    # Prime the pipeline with this step's chunk on the first iteration.
    @pl.when(i == 0)
    def _():
        issue_chunk(i, slot)            # chunk 0 -> slot 0

    # Prefetch the next chunk into the other slot; its HBM reads overlap the
    # wait + scale + store of the current chunk.
    @pl.when(i + 1 < nsteps)
    def _():
        issue_chunk(i + 1, 1 - slot)

    # Single wait covering all tq row copies of the current chunk: each copy
    # signals sem[slot] with one (1, D) row, so one wait on a (tq, D)
    # descriptor consumes exactly tq * row_bytes.
    pltpu.make_async_copy(
        table_ref.at[pl.ds(0, tq)], buf_ref.at[slot], sem_ref.at[slot]
    ).wait()

    out_ref[...] = (buf_ref[slot] * scale).astype(out_ref.dtype)


def _embed_hbm_gather(ids, table, scale, n, max_tokens_per_step):
    vocab, d = table.shape
    itemsize = table.dtype.itemsize
    # ~4 (tq, d) tiles live in VMEM: the manual (2, tq, d) gather double buffer
    # plus the auto double-buffered (tq, d) output block.  Budget 24 MiB so it
    # fits the 32 MiB scoped-VMEM limit on all of v5e/v6e/v7x.
    budget = 24 * 1024 * 1024
    cap = min(max_tokens_per_step, max(8, budget // (4 * d * itemsize)), vocab)
    tq = _pick_chunk(n, cap)
    n_pad = _round_up(n, tq)
    if n_pad != n:
        ids = jnp.pad(ids, (0, n_pad - n))                    # pad with valid id 0

    # TODO(synk): stream ids as a blocked SMEM input (current + lookahead chunk)
    # instead of scalar-prefetching all of them, to remove the SMEM-capacity
    # cliff for very large B*S.
    # TODO(synk): on v7x, add a leading size-2 "parallel" grid axis so both
    # TensorCores split the descriptor-issue work.
    out = pl.pallas_call(
        functools.partial(_embed_hbm_kernel, tq=tq, scale=scale),
        out_shape=jax.ShapeDtypeStruct((n_pad, d), table.dtype),
        grid_spec=pltpu.PrefetchScalarGridSpec(
            num_scalar_prefetch=1,                            # ids -> SMEM
            grid=(n_pad // tq,),
            in_specs=[pl.BlockSpec(memory_space=pl.ANY)],     # table stays in HBM
            out_specs=pl.BlockSpec((tq, d), lambda i, ids_smem: (i, 0)),
            scratch_shapes=[
                pltpu.VMEM((2, tq, d), table.dtype),          # gather double buffer
                pltpu.SemaphoreType.DMA((2,)),
            ],
        ),
        # The manual double buffer carries state across grid steps, so the
        # grid must execute sequentially.
        compiler_params=pltpu.CompilerParams(
            dimension_semantics=("arbitrary",),
            vmem_limit_bytes=32 * 1024 * 1024),
    )(ids, table)
    return out if n_pad == n else out[:n]


# ----------------------------------------------------------------------------
# Public wrapper == InputEmbedding.forward
# ----------------------------------------------------------------------------
def input_embedding(x_ids: jax.Array, table: jax.Array, *,
                    max_tokens_per_step: int = 1024) -> jax.Array:
    """Pallas equivalent of InputEmbedding.forward: embedding(x) * sqrt(d_model)."""
    b, s = x_ids.shape
    vocab, d_model = table.shape
    n = b * s
    scale = math.sqrt(d_model)

    # nn.Embedding raises on out-of-range ids; clamp so a bad id never reads
    # outside the table.
    # TODO(synk): surface an error for out-of-range ids instead of clamping.
    ids = jnp.clip(x_ids.reshape(-1).astype(jnp.int32), 0, vocab - 1)

    table_bytes = vocab * d_model * table.dtype.itemsize
    if vocab <= 2048 and table_bytes <= 4 * 1024 * 1024:
        out = _embed_vmem_table(ids, table, scale, n)
    else:
        out = _embed_hbm_gather(ids, table, scale, n, max_tokens_per_step)
    return out.reshape(b, s, d_model)


if __name__ == "__main__":
    key = jax.random.PRNGKey(0)
    k_tab, k_ids, k_tab2, k_ids2 = jax.random.split(key, 4)

    # Config A: small vocab -> VMEM-resident-table fast path, lane-dense D.
    d_model, vocab_size, batch, seq = 128, 64, 2, 8
    table = jax.random.normal(k_tab, (vocab_size, d_model), dtype=jnp.float32)
    x = jax.random.randint(k_ids, (batch, seq), 0, vocab_size, dtype=jnp.int32)
    out = jax.block_until_ready(input_embedding(x, table))
    ref = table[x] * math.sqrt(d_model)
    assert out.shape == (batch, seq, d_model)
    # MXU f32 one-hot matmul may use bf16 passes -> modest tolerance.
    assert jnp.allclose(out, ref, atol=1e-3, rtol=5e-3)

    # Config B: d_model not a multiple of 128 (masked-lane output block).
    d_small = 32
    table_small = jax.random.normal(k_tab, (vocab_size, d_small), dtype=jnp.float32)
    out_small = jax.block_until_ready(input_embedding(x, table_small))
    ref_small = table_small[x] * math.sqrt(d_small)
    assert out_small.shape == (batch, seq, d_small)
    assert jnp.allclose(out_small, ref_small, atol=1e-3, rtol=5e-3)

    # Config C: larger vocab -> HBM DMA-gather path, multi-step grid exercising
    # the cross-step double buffer, chunk padding and the post-kernel slice.
    d_big, vocab_big, batch2, seq2 = 256, 4096, 2, 25
    table_big = jax.random.normal(k_tab2, (vocab_big, d_big), dtype=jnp.float32)
    x2 = jax.random.randint(k_ids2, (batch2, seq2), 0, vocab_big, dtype=jnp.int32)
    out_big = jax.block_until_ready(
        input_embedding(x2, table_big, max_tokens_per_step=16))
    ref_big = table_big[x2] * math.sqrt(d_big)
    assert out_big.shape == (batch2, seq2, d_big)
    assert jnp.allclose(out_big, ref_big, atol=1e-6, rtol=1e-6)

    print("KERNEL_OK")
</pallas_src>

<mosaic_0001>
module attributes {stable_mosaic.version = 11 : i64} {
  func.func @_embed_vmem_kernel(%arg0: i32, %arg1: memref<16x1xi32, #tpu.memory_space<vmem>>, %arg2: memref<64x128xf32, #tpu.memory_space<vmem>>, %arg3: memref<16x128xf32, #tpu.memory_space<vmem>>) attributes {dimension_semantics = [#tpu.dimension_semantics<parallel>], iteration_bounds = array<i64: 1>, scalar_prefetch = 0 : i64, scratch_operands = 0 : i64, tpu.core_type = #tpu.core_type<tc>, window_params = [{transform_indices = @transform_0, window_bounds = array<i64: 16, 1>}, {pipeline_mode = #tpu.pipeline_mode<synchronous>, transform_indices = @transform_1, window_bounds = array<i64: 64, 128>}, {transform_indices = @transform_2, window_bounds = array<i64: 16, 128>}]} {
    %c0 = arith.constant 0 : index
    %c0_0 = arith.constant 0 : index
    %0 = vector.load %arg1[%c0, %c0_0] : memref<16x1xi32, #tpu.memory_space<vmem>>, vector<16x1xi32>
    %1 = tpu.iota {dimensions = array<i32: 1>} : vector<16x64xi32>
    %2 = vector.broadcast %0 : vector<16x1xi32> to vector<16x64xi32>
    %3 = arith.cmpi eq, %2, %1 : vector<16x64xi32>
    %4 = arith.extui %3 : vector<16x64xi1> to vector<16x64xi32>
    %5 = arith.sitofp %4 : vector<16x64xi32> to vector<16x64xf32>
    %c0_1 = arith.constant 0 : index
    %c0_2 = arith.constant 0 : index
    %6 = vector.load %arg2[%c0_1, %c0_2] : memref<64x128xf32, #tpu.memory_space<vmem>>, vector<64x128xf32>
    %cst = arith.constant dense<0.000000e+00> : vector<16x128xf32>
    %7 = tpu.matmul %5, %6, %cst {dimension_numbers = #tpu.dot_dimension_numbers<[1], [0], [0], [1], [0, 0, 1, 1], [], []>} : vector<16x64xf32>, vector<64x128xf32>, vector<16x128xf32> -> vector<16x128xf32>
    %cst_3 = arith.constant 11.3137083 : f32
    %8 = vector.broadcast %cst_3 : f32 to vector<16x128xf32>
    %9 = arith.mulf %7, %8 : vector<16x128xf32>
    %c0_4 = arith.constant 0 : index
    %c0_5 = arith.constant 0 : index
    %10 = vector.load %arg3[%c0_4, %c0_5] : memref<16x128xf32, #tpu.memory_space<vmem>>, vector<16x128xf32>
    tpu.vector_store %arg3[%c0_4, %c0_5], %9 {strides = array<i32>} : memref<16x128xf32, #tpu.memory_space<vmem>>, vector<16x128xf32>,
    return
  }
  func.func @transform_0(%arg0: i32) -> (i32, i32) {
    %c0_i32 = arith.constant 0 : i32
    %c0_i32_0 = arith.constant 0 : i32
    return %arg0, %c0_i32 : i32, i32
  }
  func.func @transform_1(%arg0: i32) -> (i32, i32) {
    %c0_i32 = arith.constant 0 : i32
    %c0_i32_0 = arith.constant 0 : i32
    %c0_i32_1 = arith.constant 0 : i32
    return %c0_i32, %c0_i32_0 : i32, i32
  }
  func.func @transform_2(%arg0: i32) -> (i32, i32) {
    %c0_i32 = arith.constant 0 : i32
    %c0_i32_0 = arith.constant 0 : i32
    return %arg0, %c0_i32 : i32, i32
  }
}

</mosaic_0001>

<llo_original>
// kernel: tpu_custom_call.1
$region0: #{tpu_custom_call.1}
  #allocation0 [shape = 'u32[]', space=smem, size = 0x4, offset = 0x4, fixed_abs, tag = 'smem constant byte address 0x4 - core index']
  #allocation1 [shape = 'u32[144,128]{1,0:T(1,128)}', space=vmem, size = 0x12000, scoped, tag = 'internal scratch']
  %s0 = inlined_call_operand.vmem [shape: s32[16,1], index: 0, kind: input, shape index: {}]
  %s1 = inlined_call_operand.hbm [shape: f32[64,128], index: 1, kind: input, shape index: {}]
  %s2 = inlined_call_operand.hbm [shape: f32[16,128], index: 2, kind: output, shape index: {}]
  %s3 = sld [smem:[#allocation0]]
  $region22: #{tpu_custom_call.1} parent=0
    _
  %s5 = ssub.s32 1, %s3
  %s6 = scalar_select 0, %s5, %s3
  $region1: #{tpu_custom_call.1} parent=0
    #allocation2 [shape = 'u8[32768]{0}', space=vmem, size = 0x8000, scoped, tag = 'input window, operand 1, single buffered']
    #allocation3 [shape = 's32[1]{0}', space=sflag, size = 0x4, scoped, tag = 'scoped memory for tpu_custom_call.1']
    #allocation4 [shape = 's32[1]{0}', space=sflag, size = 0x4, scoped, tag = 'scoped memory for tpu_custom_call.1']
    #allocation5 [shape = 'u8[8192]{0}', space=vmem, size = 0x2000, scoped, tag = 'output window, operand 0, single buffered']
    %7 = vsyncpa [#allocation3], 0
    %8 = vsyncpa [#allocation4], 0
    // Predicated region
    $region2: #{tpu_custom_call.1} parent=1 // pred_check
      _
    $region3: #{tpu_custom_call.1} parent=1 // pred_check_branch
      %10 = sbr.rel (0) target = $region5
    $region4: #{tpu_custom_call.1} parent=1 // pred_region
      _
    $region5: #{tpu_custom_call.1} parent=1 // pred_fallthru
      _
    // Predicated region
    $region6: #{tpu_custom_call.1} parent=1 // pred_check
      _
    $region7: #{tpu_custom_call.1} parent=1 // pred_check_branch
      %12 = sbr.rel (0) target = $region9
    $region8: #{tpu_custom_call.1} parent=1 // pred_region
      %s14 = ssub.s32 1024, 1024
      %15 = vsyncadd [#allocation3], %s14
      %s16 = sshll.u32 [#allocation2], 4
      %s17 = int_to_ptr.vmem [resolvable:$true] %s16
      %22 = dma.hbm_to_vmem [thread:$0]  %s1, 1024, %s17, [#allocation3], 128, 128, 8
    $region9: #{tpu_custom_call.1} parent=1 // pred_fallthru
      _
    // Predicated region
    $region10: #{tpu_custom_call.1} parent=1 // pred_check
      _
    $region11: #{tpu_custom_call.1} parent=1 // pred_check_branch
      %24 = sbr.rel (0) target = $region13
    $region12: #{tpu_custom_call.1} parent=1 // pred_region
      %25 = dma.done [#allocation3], 1024
    $region13: #{tpu_custom_call.1} parent=1 // pred_fallthru
      _
    %v26 = vld [vmem:[%s0] sm:$0xff]
    %v27 = vld [vmem:[%s0 + $0x8] sm:$0xff]
    %v28 = vlaneseq
    %v29 = vand.u32 %v28, 127
    %30 = vset.pattern.permute.xlu0 0
    %31 = vperm.xlu0 %30, %v26
    %v32 = vpop.permute.xlu0 %31
    %33 = vset.pattern.permute.xlu0 0
    %34 = vperm.xlu0 %33, %v27
    %v35 = vpop.permute.xlu0 %34
    %vm36 = vcmp.eq.s32.totalorder %v32, %v29
    %vm37 = vcmp.eq.s32.totalorder %v35, %v29
    %v38 = vsel %vm36, 1, 0
    %v39 = vsel %vm37, 1, 0
    %v40 = vcvt.s32.f32 %v38
    %v41 = vcvt.s32.f32 %v39
    %v42 = vld [vmem:[#allocation2] sm:$0xff]
    %v43 = vld [vmem:[#allocation2 + $0x8] sm:$0xff]
    %v44 = vld [vmem:[#allocation2 + $0x10] sm:$0xff]
    %v45 = vld [vmem:[#allocation2 + $0x18] sm:$0xff]
    %v46 = vld [vmem:[#allocation2 + $0x20] sm:$0xff]
    %v47 = vld [vmem:[#allocation2 + $0x28] sm:$0xff]
    %v48 = vld [vmem:[#allocation2 + $0x30] sm:$0xff]
    %v49 = vld [vmem:[#allocation2 + $0x38] sm:$0xff]
    %vm50 = vcmask 523264
    %v52 = vsel %vm50, %v40, 0
    %v55 = vsel %vm50, %v41, 0
    %57 = vmatprep.subr.mxu0 0.0
    %58 = vmatpush1.msra.mxu0 0.0
    %59 = vmatprep.subr.mxu0 0.0
    %60 = vmatpush1.msra.mxu0 0.0
    %61 = vmatprep.subr.mxu0 0.0
    %62 = vmatpush1.msra.mxu0 0.0
    %63 = vmatprep.subr.mxu0 0.0
    %64 = vmatpush1.msra.mxu0 0.0
    %65 = vmatprep.subr.mxu0 0.0
    %66 = vmatpush1.msra.mxu0 0.0
    %67 = vmatprep.subr.mxu0 0.0
    %68 = vmatpush1.msra.mxu0 0.0
    %69 = vmatprep.subr.mxu0 0.0
    %70 = vmatpush1.msra.mxu0 0.0
    %71 = vmatprep.subr.mxu0 0.0
    %72 = vmatpush1.msra.mxu0 0.0
    %73 = vmatprep.subr.mxu0 0.0
    %74 = vmatpush1.msra.mxu0 %v49
    %75 = vmatprep.subr.mxu0 0.0
    %76 = vmatpush1.msra.mxu0 %v48
    %77 = vmatprep.subr.mxu0 0.0
    %78 = vmatpush1.msra.mxu0 %v47
    %79 = vmatprep.subr.mxu0 0.0
    %80 = vmatpush1.msra.mxu0 %v46
    %81 = vmatprep.subr.mxu0 0.0
    %82 = vmatpush1.msra.mxu0 %v45
    %83 = vmatprep.subr.mxu0 0.0
    %84 = vmatpush1.msra.mxu0 %v44
    %85 = vmatprep.subr.mxu0 0.0
    %86 = vmatpush1.msra.mxu0 %v43
    %87 = vmatprep.subr.mxu0 0.0
    %88 = vmatpush1.msra.mxu0 %v42
    %89 = vmatprep.subr.mxu0 0.0
    %90 = vmatpush2.msra.mxu0 0.0
    %91 = vmatprep.subr.mxu0 0.0
    %92 = vmatpush2.msra.mxu0 0.0
    %93 = vmatprep.subr.mxu0 0.0
    %94 = vmatpush2.msra.mxu0 0.0
    %95 = vmatprep.subr.mxu0 0.0
    %96 = vmatpush2.msra.mxu0 0.0
    %97 = vmatprep.subr.mxu0 0.0
    %98 = vmatpush2.msra.mxu0 0.0
    %99 = vmatprep.subr.mxu0 0.0
    %100 = vmatpush2.msra.mxu0 0.0
    %101 = vmatprep.subr.mxu0 0.0
    %102 = vmatpush2.msra.mxu0 0.0
    %103 = vmatprep.subr.mxu0 0.0
    %104 = vmatpush2.msra.mxu0 0.0
    %105 = vmatprep.subr.mxu0 0.0
    %106 = vmatpush2.msra.mxu0 0.0
    %107 = vmatprep.subr.mxu0 0.0
    %108 = vmatpush2.msra.mxu0 0.0
    %109 = vmatprep.subr.mxu0 0.0
    %110 = vmatpush2.msra.mxu0 0.0
    %111 = vmatprep.subr.mxu0 0.0
    %112 = vmatpush2.msra.mxu0 0.0
    %113 = vmatprep.subr.mxu0 0.0
    %114 = vmatpush2.msra.mxu0 0.0
    %115 = vmatprep.subr.mxu0 0.0
    %116 = vmatpush2.msra.mxu0 0.0
    %117 = vmatprep.subr.mxu0 0.0
    %118 = vmatpush2.msra.mxu0 0.0
    %119 = vmatprep.subr.mxu0 0.0
    %120 = vmatpush2.msra.mxu0 0.0
    %121 = vmatprep.mubr.f32.mxu0 0.0
    %122 = vmatmul.mubr.f32.gmra.mxu0 %v52
    %v123 = vpop.f32.mrf.mxu0
    %v124 = vadd.f32 0.0, %v123
    %v125 = vpop.f32.mrf.mxu0
    %126 = vmatprep.mubr.f32.mxu0 0.0
    %127 = vmatmul.mubr.f32.gmra.mxu0 %v55
    %v128 = vpop.f32.mrf.mxu0
    %v129 = vadd.f32 0.0, %v128
    %v130 = vpop.f32.mrf.mxu0
    %131 = vdwg.mxu0
    %v132 = vmul.f32 %v124, 11.313708
    %v133 = vmul.f32 %v129, 11.313708
    %134 = vst [vmem:[#allocation5] sm:$0xff] %v132
    %135 = vst [vmem:[#allocation5 + $0x8] sm:$0xff] %v133
    // Predicated region
    $region14: #{tpu_custom_call.1} parent=1 // pred_check
      _
    $region15: #{tpu_custom_call.1} parent=1 // pred_check_branch
      %137 = sbr.rel (0) target = $region17
    $region16: #{tpu_custom_call.1} parent=1 // pred_region
      %s139 = ssub.s32 256, 256
      %140 = vsyncadd [#allocation4], %s139
      %s141 = sshll.u32 [#allocation5], 4
      %s142 = int_to_ptr.vmem [resolvable:$true] %s141
      %147 = dma.vmem_to_hbm [thread:$0]  %s142, 256, %s2, [#allocation4], 128, 128, 8
    $region17: #{tpu_custom_call.1} parent=1 // pred_fallthru
      _
    // Predicated region
    $region18: #{tpu_custom_call.1} parent=1 // pred_check
      _
    $region19: #{tpu_custom_call.1} parent=1 // pred_check_branch
      %149 = sbr.rel (0) target = $region21
    $region20: #{tpu_custom_call.1} parent=1 // pred_region
      %150 = dma.done [#allocation4], 256
    $region21: #{tpu_custom_call.1} parent=1 // pred_fallthru
      _
    %151 = vsyncpa [#allocation3], 1
    %152 = vsyncpa [#allocation4], 1

</llo_original>
